<compile_context>
chip_gen: v6e
topology: v6e:2x2x1
jax: 0.10.0
libtpu: 0.0.40
codegen_flags: <defaults>
</compile_context>

<pallas_src>
import jax
import jax.numpy as jnp
from jax.experimental import pallas as pl
from jax.experimental.pallas import tpu as pltpu


def _round_up(x, n):
    return ((x + n - 1) // n) * n


# ----------------------------- Pallas kernel -------------------------------
def _gemm_bn_relu_kernel(a_ref, w_ref, scale_ref, shift_ref, o_ref):
    """Fused-K conv GEMM tile + BN (f32 epilogue) + ReLU.

    a_ref:     (tile_m, K)       bf16 im2col rows (K = 9*Cin)
    w_ref:     (K, tile_c)       bf16 weights
    scale_ref: (1, tile_c)       f32 BN scale  (gamma / sqrt(var + eps))
    shift_ref: (1, tile_c)       f32 BN shift  (beta - mean * scale)
    o_ref:     (tile_m, tile_c)  output tile
    """
    acc = jnp.dot(a_ref[...], w_ref[...], preferred_element_type=jnp.float32)
    o_ref[...] = jnp.maximum(acc * scale_ref[...] + shift_ref[...],
                             0.0).astype(o_ref.dtype)


def _fused_gemm_bn_relu(a, w, scale, shift, *, tile_m, tile_c, out_dtype):
    mp, k = a.shape
    cp = w.shape[1]
    grid = (mp // tile_m, cp // tile_c)
    return pl.pallas_call(
        _gemm_bn_relu_kernel,
        out_shape=jax.ShapeDtypeStruct((mp, cp), out_dtype),
        grid=grid,
        in_specs=[
            # Activation tile: index_map independent of the cout grid index, so
            # the block stays VMEM-resident across consecutive cout steps and
            # only the small weight tile streams from HBM.
            pl.BlockSpec((tile_m, k), lambda mi, ci: (mi, 0)),
            pl.BlockSpec((k, tile_c), lambda mi, ci: (0, ci)),
            pl.BlockSpec((1, tile_c), lambda mi, ci: (0, ci)),
            pl.BlockSpec((1, tile_c), lambda mi, ci: (0, ci)),
        ],
        out_specs=pl.BlockSpec((tile_m, tile_c), lambda mi, ci: (mi, ci)),
        compiler_params=pltpu.CompilerParams(
            # M axis parallel (megacore sharding on v7x); cout axis arbitrary so
            # the activation block index repeats across consecutive steps.
            dimension_semantics=("parallel", "arbitrary"),
            vmem_limit_bytes=48 * 1024 * 1024,
        ),
    )(a, w, scale, shift)


# ------------------------------- JAX glue ----------------------------------
def conv3x3_s2_bn_relu(x_nhwc, w, gamma, beta, run_mean, run_var,
                       eps=1e-5, out_dtype=jnp.bfloat16):
    """conv(k=3, s=2, p=1, bias=False) + BN(inference) + ReLU, NHWC in/out.

    Returns NHWC with channels zero-padded to the Cout tile width (lane-dense).
    """
    n, h, wdim, _ = x_nhwc.shape
    cout, cin = w.shape[0], w.shape[1]
    oh = (h - 1) // 2 + 1
    ow = (wdim - 1) // 2 + 1

    # bf16 BEFORE any prep pass so pad/slice/concat all run at half HBM width.
    x = x_nhwc[..., :cin].astype(jnp.bfloat16)       # drop channel padding from a previous stage
    xp = jnp.pad(x, ((0, 0), (1, 1), (1, 1), (0, 0)))            # (N, H+2, W+2, Cin)

    # Stride-2 im2col: 9 decimated taps concatenated along channels -> K = 9*Cin.
    taps = [xp[:, kh:kh + 2 * oh:2, kw:kw + 2 * ow:2, :]
            for kh in range(3) for kw in range(3)]               # each (N, OH, OW, Cin)
    a = jnp.concatenate(taps, axis=-1)                           # (N, OH, OW, 9*Cin)

    k = 9 * cin
    m_total = n * oh * ow                                        # batch folded into M
    a2 = a.reshape(m_total, k)

    # Cout tile: 128, or 256 when Cout > 128 to fill the 256-wide v6e/v7x MXU.
    # TODO(synk): prefer 128 on v5e (4x128 MXU) when Cout > 128.
    tile_c = 128 if cout <= 128 else 256
    cp = _round_up(cout, tile_c)

    # M tile: sublane-aligned, bounded for VMEM, fat enough to amortize the
    # ~0.35 us per-grid-step overhead.
    tile_m = min(512, _round_up(m_total, 8))
    mp = _round_up(m_total, tile_m)
    if mp != m_total:
        a2 = jnp.pad(a2, ((0, mp - m_total), (0, 0)))            # zero rows -> finite junk, sliced off

    # Weights (Cout, Cin, 3, 3) -> (9*Cin, Cout), bf16, Cout zero-padded.
    wt = jnp.transpose(w, (2, 3, 1, 0)).reshape(k, cout).astype(jnp.bfloat16)
    wt = jnp.pad(wt, ((0, 0), (0, cp - cout)))

    # BN scale/shift stay f32 and are applied in the kernel epilogue.
    scale = (gamma / jnp.sqrt(run_var + eps)).astype(jnp.float32)
    shift = (beta - run_mean * scale).astype(jnp.float32)
    scale = jnp.pad(scale, (0, cp - cout)).reshape(1, cp)        # padded channels -> exact zeros
    shift = jnp.pad(shift, (0, cp - cout)).reshape(1, cp)

    out2 = _fused_gemm_bn_relu(a2, wt, scale, shift, tile_m=tile_m,
                               tile_c=tile_c, out_dtype=out_dtype)  # (Mp, Cp)
    return out2[:m_total].reshape(n, oh, ow, cp)                 # NHWC, padded channels


@jax.jit
def _basic_block2_forward(x_nchw, w1, g1, b1, m1, v1, w2, g2, b2, m2, v2):
    x = jnp.transpose(x_nchw, (0, 2, 3, 1))                      # NCHW -> NHWC (once)
    h1 = conv3x3_s2_bn_relu(x, w1, g1, b1, m1, v1, out_dtype=jnp.bfloat16)
    h2 = conv3x3_s2_bn_relu(h1, w2, g2, b2, m2, v2, out_dtype=jnp.float32)
    planes = w2.shape[0]
    out = h2[..., :planes]
    return jnp.transpose(out, (0, 3, 1, 2))                      # NHWC -> NCHW


class BasicBlock2Pallas:
    def __init__(self, inplanes, planes, key):
        k1, k2 = jax.random.split(key)
        # Conv weights, PyTorch layout (Cout, Cin, 3, 3); deterministic init.
        self.w1 = 0.1 * jax.random.normal(k1, (planes, inplanes, 3, 3), jnp.float32)
        self.w2 = 0.1 * jax.random.normal(k2, (planes, planes, 3, 3), jnp.float32)
        # BatchNorm params / running stats (PyTorch defaults).
        self.g1 = jnp.ones((planes,), jnp.float32)
        self.b1 = jnp.zeros((planes,), jnp.float32)
        self.m1 = jnp.zeros((planes,), jnp.float32)
        self.v1 = jnp.ones((planes,), jnp.float32)
        self.g2 = jnp.ones((planes,), jnp.float32)
        self.b2 = jnp.zeros((planes,), jnp.float32)
        self.m2 = jnp.zeros((planes,), jnp.float32)
        self.v2 = jnp.ones((planes,), jnp.float32)
        # TODO(synk): con1x1 / bn3 exist in the torch __init__ but are unused in
        # forward(); intentionally omitted.

    def __call__(self, x_nchw):
        return _basic_block2_forward(x_nchw,
                                     self.w1, self.g1, self.b1, self.m1, self.v1,
                                     self.w2, self.g2, self.b2, self.m2, self.v2)


def _reference_forward(x_nchw, blk, eps=1e-5):
    """Pure-XLA f32 reference (eval-mode BN) for a loose numerical check."""
    def stage(x, w, g, b, m, v):
        y = jax.lax.conv_general_dilated(
            x, w, window_strides=(2, 2), padding=((1, 1), (1, 1)),
            dimension_numbers=("NCHW", "OIHW", "NCHW"))
        s = g / jnp.sqrt(v + eps)
        y = y * s[None, :, None, None] + (b - m * s)[None, :, None, None]
        return jnp.maximum(y, 0.0)
    y = stage(x_nchw, blk.w1, blk.g1, blk.b1, blk.m1, blk.v1)
    return stage(y, blk.w2, blk.g2, blk.b2, blk.m2, blk.v2)


if __name__ == "__main__":
    key = jax.random.PRNGKey(0)
    kx, kp = jax.random.split(key)
    inplanes, planes = 4, 8
    x = jax.random.normal(kx, (2, inplanes, 16, 16), jnp.float32)  # NCHW

    block = BasicBlock2Pallas(inplanes, planes, kp)
    out = jax.block_until_ready(block(x))
    assert out.shape == (2, planes, 4, 4), out.shape
    assert bool(jnp.all(jnp.isfinite(out)))

    # Loose check vs. f32 XLA reference (kernel uses bf16 operands, f32 accumulate).
    ref = jax.block_until_ready(_reference_forward(x, block))
    max_err = float(jnp.max(jnp.abs(out - ref)))
    assert max_err < 0.1, f"max abs error {max_err}"

    print("KERNEL_OK")
</pallas_src>

<mosaic_0001>
module attributes {stable_mosaic.version = 11 : i64} {
  func.func @_gemm_bn_relu_kernel(%arg0: i32, %arg1: i32, %arg2: memref<128x36xbf16, #tpu.memory_space<vmem>>, %arg3: memref<36x128xbf16, #tpu.memory_space<vmem>>, %arg4: memref<1x128xf32, #tpu.memory_space<vmem>>, %arg5: memref<1x128xf32, #tpu.memory_space<vmem>>, %arg6: memref<128x128xbf16, #tpu.memory_space<vmem>>) attributes {dimension_semantics = [#tpu.dimension_semantics<parallel>, #tpu.dimension_semantics<arbitrary>], iteration_bounds = array<i64: 1, 1>, scalar_prefetch = 0 : i64, scratch_operands = 0 : i64, tpu.core_type = #tpu.core_type<tc>, window_params = [{transform_indices = @transform_0, window_bounds = array<i64: 128, 36>}, {transform_indices = @transform_1, window_bounds = array<i64: 36, 128>}, {transform_indices = @transform_2, window_bounds = array<i64: 1, 128>}, {transform_indices = @transform_3, window_bounds = array<i64: 1, 128>}, {transform_indices = @transform_4, window_bounds = array<i64: 128, 128>}]} {
    %c0 = arith.constant 0 : index
    %c0_0 = arith.constant 0 : index
    %0 = vector.load %arg2[%c0, %c0_0] : memref<128x36xbf16, #tpu.memory_space<vmem>>, vector<128x36xbf16>
    %c0_1 = arith.constant 0 : index
    %c0_2 = arith.constant 0 : index
    %1 = vector.load %arg3[%c0_1, %c0_2] : memref<36x128xbf16, #tpu.memory_space<vmem>>, vector<36x128xbf16>
    %cst = arith.constant dense<0.000000e+00> : vector<128x128xf32>
    %2 = tpu.matmul %0, %1, %cst {dimension_numbers = #tpu.dot_dimension_numbers<[1], [0], [0], [1], [0, 0, 1, 1], [], []>} : vector<128x36xbf16>, vector<36x128xbf16>, vector<128x128xf32> -> vector<128x128xf32>
    %c0_3 = arith.constant 0 : index
    %c0_4 = arith.constant 0 : index
    %3 = vector.load %arg4[%c0_3, %c0_4] : memref<1x128xf32, #tpu.memory_space<vmem>>, vector<1x128xf32>
    %4 = vector.broadcast %3 : vector<1x128xf32> to vector<128x128xf32>
    %5 = arith.mulf %2, %4 : vector<128x128xf32>
    %c0_5 = arith.constant 0 : index
    %c0_6 = arith.constant 0 : index
    %6 = vector.load %arg5[%c0_5, %c0_6] : memref<1x128xf32, #tpu.memory_space<vmem>>, vector<1x128xf32>
    %7 = vector.broadcast %6 : vector<1x128xf32> to vector<128x128xf32>
    %8 = arith.addf %5, %7 : vector<128x128xf32>
    %cst_7 = arith.constant 0.000000e+00 : f32
    %9 = vector.broadcast %cst_7 : f32 to vector<128x128xf32>
    %10 = arith.maximumf %8, %9 : vector<128x128xf32>
    %11 = arith.truncf %10 : vector<128x128xf32> to vector<128x128xbf16>
    %c0_8 = arith.constant 0 : index
    %c0_9 = arith.constant 0 : index
    %12 = vector.load %arg6[%c0_8, %c0_9] : memref<128x128xbf16, #tpu.memory_space<vmem>>, vector<128x128xbf16>
    tpu.vector_store %arg6[%c0_8, %c0_9], %11 {strides = array<i32>} : memref<128x128xbf16, #tpu.memory_space<vmem>>, vector<128x128xbf16>,
    return
  }
  func.func @transform_0(%arg0: i32, %arg1: i32) -> (i32, i32) {
    %c0_i32 = arith.constant 0 : i32
    %c0_i32_0 = arith.constant 0 : i32
    return %arg0, %c0_i32 : i32, i32
  }
  func.func @transform_1(%arg0: i32, %arg1: i32) -> (i32, i32) {
    %c0_i32 = arith.constant 0 : i32
    %c0_i32_0 = arith.constant 0 : i32
    return %c0_i32, %arg1 : i32, i32
  }
  func.func @transform_2(%arg0: i32, %arg1: i32) -> (i32, i32) {
    %c0_i32 = arith.constant 0 : i32
    %c0_i32_0 = arith.constant 0 : i32
    return %c0_i32, %arg1 : i32, i32
  }
  func.func @transform_3(%arg0: i32, %arg1: i32) -> (i32, i32) {
    %c0_i32 = arith.constant 0 : i32
    %c0_i32_0 = arith.constant 0 : i32
    return %c0_i32, %arg1 : i32, i32
  }
  func.func @transform_4(%arg0: i32, %arg1: i32) -> (i32, i32) {
    %c0_i32 = arith.constant 0 : i32
    return %arg0, %arg1 : i32, i32
  }
}

module attributes {stable_mosaic.version = 11 : i64} {
  func.func @_gemm_bn_relu_kernel(%arg0: i32, %arg1: i32, %arg2: memref<32x72xbf16, #tpu.memory_space<vmem>>, %arg3: memref<72x128xbf16, #tpu.memory_space<vmem>>, %arg4: memref<1x128xf32, #tpu.memory_space<vmem>>, %arg5: memref<1x128xf32, #tpu.memory_space<vmem>>, %arg6: memref<32x128xf32, #tpu.memory_space<vmem>>) attributes {dimension_semantics = [#tpu.dimension_semantics<parallel>, #tpu.dimension_semantics<arbitrary>], iteration_bounds = array<i64: 1, 1>, scalar_prefetch = 0 : i64, scratch_operands = 0 : i64, tpu.core_type = #tpu.core_type<tc>, window_params = [{transform_indices = @transform_0, window_bounds = array<i64: 32, 72>}, {transform_indices = @transform_1, window_bounds = array<i64: 72, 128>}, {transform_indices = @transform_2, window_bounds = array<i64: 1, 128>}, {transform_indices = @transform_3, window_bounds = array<i64: 1, 128>}, {transform_indices = @transform_4, window_bounds = array<i64: 32, 128>}]} {
    %c0 = arith.constant 0 : index
    %c0_0 = arith.constant 0 : index
    %0 = vector.load %arg2[%c0, %c0_0] : memref<32x72xbf16, #tpu.memory_space<vmem>>, vector<32x72xbf16>
    %c0_1 = arith.constant 0 : index
    %c0_2 = arith.constant 0 : index
    %1 = vector.load %arg3[%c0_1, %c0_2] : memref<72x128xbf16, #tpu.memory_space<vmem>>, vector<72x128xbf16>
    %cst = arith.constant dense<0.000000e+00> : vector<32x128xf32>
    %2 = tpu.matmul %0, %1, %cst {dimension_numbers = #tpu.dot_dimension_numbers<[1], [0], [0], [1], [0, 0, 1, 1], [], []>} : vector<32x72xbf16>, vector<72x128xbf16>, vector<32x128xf32> -> vector<32x128xf32>
    %c0_3 = arith.constant 0 : index
    %c0_4 = arith.constant 0 : index
    %3 = vector.load %arg4[%c0_3, %c0_4] : memref<1x128xf32, #tpu.memory_space<vmem>>, vector<1x128xf32>
    %4 = vector.broadcast %3 : vector<1x128xf32> to vector<32x128xf32>
    %5 = arith.mulf %2, %4 : vector<32x128xf32>
    %c0_5 = arith.constant 0 : index
    %c0_6 = arith.constant 0 : index
    %6 = vector.load %arg5[%c0_5, %c0_6] : memref<1x128xf32, #tpu.memory_space<vmem>>, vector<1x128xf32>
    %7 = vector.broadcast %6 : vector<1x128xf32> to vector<32x128xf32>
    %8 = arith.addf %5, %7 : vector<32x128xf32>
    %cst_7 = arith.constant 0.000000e+00 : f32
    %9 = vector.broadcast %cst_7 : f32 to vector<32x128xf32>
    %10 = arith.maximumf %8, %9 : vector<32x128xf32>
    %c0_8 = arith.constant 0 : index
    %c0_9 = arith.constant 0 : index
    %11 = vector.load %arg6[%c0_8, %c0_9] : memref<32x128xf32, #tpu.memory_space<vmem>>, vector<32x128xf32>
    tpu.vector_store %arg6[%c0_8, %c0_9], %10 {strides = array<i32>} : memref<32x128xf32, #tpu.memory_space<vmem>>, vector<32x128xf32>,
    return
  }
  func.func @transform_0(%arg0: i32, %arg1: i32) -> (i32, i32) {
    %c0_i32 = arith.constant 0 : i32
    %c0_i32_0 = arith.constant 0 : i32
    return %arg0, %c0_i32 : i32, i32
  }
  func.func @transform_1(%arg0: i32, %arg1: i32) -> (i32, i32) {
    %c0_i32 = arith.constant 0 : i32
    %c0_i32_0 = arith.constant 0 : i32
    return %c0_i32, %arg1 : i32, i32
  }
  func.func @transform_2(%arg0: i32, %arg1: i32) -> (i32, i32) {
    %c0_i32 = arith.constant 0 : i32
    %c0_i32_0 = arith.constant 0 : i32
    return %c0_i32, %arg1 : i32, i32
  }
  func.func @transform_3(%arg0: i32, %arg1: i32) -> (i32, i32) {
    %c0_i32 = arith.constant 0 : i32
    %c0_i32_0 = arith.constant 0 : i32
    return %c0_i32, %arg1 : i32, i32
  }
  func.func @transform_4(%arg0: i32, %arg1: i32) -> (i32, i32) {
    %c0_i32 = arith.constant 0 : i32
    return %arg0, %arg1 : i32, i32
  }
}

</mosaic_0001>

<llo_original>
// kernel: _basic_block2_forward.2
$region0: #{_basic_block2_forward.2}
  #allocation0 [shape = 'u32[]', space=smem, size = 0x4, offset = 0x4, fixed_abs, tag = 'smem constant byte address 0x4 - core index']
  #allocation1 [shape = 'u32[144,128]{1,0:T(1,128)}', space=vmem, size = 0x12000, scoped, tag = 'internal scratch']
  %s0 = inlined_call_operand.vmem [shape: bf16[128,36], index: 0, kind: input, shape index: {}]
  %s1 = inlined_call_operand.vmem [shape: bf16[36,128], index: 1, kind: input, shape index: {}]
  %s2 = inlined_call_operand.vmem [shape: f32[1,128], index: 2, kind: input, shape index: {}]
  %s3 = inlined_call_operand.vmem [shape: f32[1,128], index: 3, kind: input, shape index: {}]
  %s4 = inlined_call_operand.vmem [shape: bf16[128,128], index: 4, kind: output, shape index: {}]
  %s5 = sld [smem:[#allocation0]]
  $region26: #{_basic_block2_forward.2} parent=0
    _
  %s7 = ssub.s32 1, %s5
  %s8 = scalar_select 0, %s7, %s5
  // Predicated region
  $region2: #{_basic_block2_forward.2} parent=0 // pred_check
    _
  $region3: #{_basic_block2_forward.2} parent=0 // pred_check_branch
    %10 = sbr.rel (0) target = $region5
  $region4: #{_basic_block2_forward.2} parent=0 // pred_region
    _
  $region5: #{_basic_block2_forward.2} parent=0 // pred_fallthru
    _
  // Predicated region
  $region6: #{_basic_block2_forward.2} parent=0 // pred_check
    _
  $region7: #{_basic_block2_forward.2} parent=0 // pred_check_branch
    %12 = sbr.rel (0) target = $region9
  $region8: #{_basic_block2_forward.2} parent=0 // pred_region
    _
  $region9: #{_basic_block2_forward.2} parent=0 // pred_fallthru
    _
  // Predicated region
  $region10: #{_basic_block2_forward.2} parent=0 // pred_check
    _
  $region11: #{_basic_block2_forward.2} parent=0 // pred_check_branch
    %14 = sbr.rel (0) target = $region13
  $region12: #{_basic_block2_forward.2} parent=0 // pred_region
    _
  $region13: #{_basic_block2_forward.2} parent=0 // pred_fallthru
    _
  // Predicated region
  $region14: #{_basic_block2_forward.2} parent=0 // pred_check
    _
  $region15: #{_basic_block2_forward.2} parent=0 // pred_check_branch
    %16 = sbr.rel (0) target = $region17
  $region16: #{_basic_block2_forward.2} parent=0 // pred_region
    _
  $region17: #{_basic_block2_forward.2} parent=0 // pred_fallthru
    _
  %v18 = vld [vmem:[%s0] sm:$0xf]
  %v19 = vld [vmem:[%s0 + $0x4] sm:$0xf]
  %v20 = vld [vmem:[%s0 + $0x8] sm:$0xf]
  %v21 = vld [vmem:[%s0 + $0xc] sm:$0xf]
  %v22 = vld [vmem:[%s0 + $0x10] sm:$0xf]
  %v23 = vld [vmem:[%s0 + $0x14] sm:$0xf]
  %v24 = vld [vmem:[%s0 + $0x18] sm:$0xf]
  %v25 = vld [vmem:[%s0 + $0x1c] sm:$0xf]
  %v26 = vld [vmem:[%s0 + $0x20] sm:$0xf]
  %v27 = vld [vmem:[%s0 + $0x24] sm:$0xf]
  %v28 = vld [vmem:[%s0 + $0x28] sm:$0xf]
  %v29 = vld [vmem:[%s0 + $0x2c] sm:$0xf]
  %v30 = vld [vmem:[%s0 + $0x30] sm:$0xf]
  %v31 = vld [vmem:[%s0 + $0x34] sm:$0xf]
  %v32 = vld [vmem:[%s0 + $0x38] sm:$0xf]
  %v33 = vld [vmem:[%s0 + $0x3c] sm:$0xf]
  %v34 = vld [vmem:[%s1] sm:$0xf]
  %v35 = vld [vmem:[%s1 + $0x4] sm:$0xf]
  %v36 = vld [vmem:[%s1 + $0x8] sm:$0xf]
  %v37 = vld [vmem:[%s1 + $0xc] sm:$0xf]
  %v38 = vld [vmem:[%s1 + $0x10] sm:$0x3]
  %v55 = vunpack.c.l.b16 %v18
  %v56 = vunpack.c.l.b16 %v19
  %v57 = vunpack.c.l.b16 %v20
  %v58 = vunpack.c.l.b16 %v21
  %v59 = vunpack.c.l.b16 %v22
  %v60 = vunpack.c.l.b16 %v23
  %v61 = vunpack.c.l.b16 %v24
  %v62 = vunpack.c.l.b16 %v25
  %v63 = vunpack.c.l.b16 %v26
  %v64 = vunpack.c.l.b16 %v27
  %v65 = vunpack.c.l.b16 %v28
  %v66 = vunpack.c.l.b16 %v29
  %v67 = vunpack.c.l.b16 %v30
  %v68 = vunpack.c.l.b16 %v31
  %v69 = vunpack.c.l.b16 %v32
  %v70 = vunpack.c.l.b16 %v33
  %v71 = vpack.c.b16 %v56, %v55
  %v72 = vpack.c.b16 %v58, %v57
  %v73 = vpack.c.b16 %v60, %v59
  %v74 = vpack.c.b16 %v62, %v61
  %v75 = vpack.c.b16 %v64, %v63
  %v76 = vpack.c.b16 %v66, %v65
  %v77 = vpack.c.b16 %v68, %v67
  %v78 = vpack.c.b16 %v70, %v69
  %v84 = vunpack.c.l.b16 %v34
  %v85 = vunpack.c.l.b16 %v35
  %v86 = vunpack.c.l.b16 %v36
  %v87 = vunpack.c.l.b16 %v37
  %v88 = vunpack.c.l.b16 %v38
  %v89 = vpack.c.b16 %v85, %v84
  %v90 = vpack.c.b16 %v87, %v86
  %v91 = vpack.c.b16 %v88, %v88
  %vm94 = vcmask 293888
  %v96 = vsel %vm94, %v71, 0
  %v99 = vsel %vm94, %v72, 0
  %v102 = vsel %vm94, %v73, 0
  %v105 = vsel %vm94, %v74, 0
  %v108 = vsel %vm94, %v75, 0
  %v111 = vsel %vm94, %v76, 0
  %v114 = vsel %vm94, %v77, 0
  %v117 = vsel %vm94, %v78, 0
  %vm119 = vcmask 1041408
  %v121 = vsel %vm119, %v91, 0
  %123 = vmatprep.subr.bf16.mxu0 0
  %124 = vmatpush1.bf16.msra.mxu0 0
  %125 = vmatprep.subr.bf16.mxu0 0
  %126 = vmatpush1.bf16.msra.mxu0 0
  %127 = vmatprep.subr.bf16.mxu0 0
  %128 = vmatpush1.bf16.msra.mxu0 0
  %129 = vmatprep.subr.bf16.mxu0 0
  %130 = vmatpush1.bf16.msra.mxu0 0
  %131 = vmatprep.subr.bf16.mxu0 0
  %132 = vmatpush1.bf16.msra.mxu0 0
  %133 = vmatprep.subr.bf16.mxu0 0
  %134 = vmatpush1.bf16.msra.mxu0 %v121
  %135 = vmatprep.subr.bf16.mxu0 0
  %136 = vmatpush1.bf16.msra.mxu0 %v90
  %137 = vmatprep.subr.bf16.mxu0 0
  %138 = vmatpush1.bf16.msra.mxu0 %v89
  %139 = vmatprep.subr.bf16.mxu0 0
  %140 = vmatpush2.bf16.msra.mxu0 0
  %141 = vmatprep.subr.bf16.mxu0 0
  %142 = vmatpush2.bf16.msra.mxu0 0
  %143 = vmatprep.subr.bf16.mxu0 0
  %144 = vmatpush2.bf16.msra.mxu0 0
  %145 = vmatprep.subr.bf16.mxu0 0
  %146 = vmatpush2.bf16.msra.mxu0 0
  %147 = vmatprep.subr.bf16.mxu0 0
  %148 = vmatpush2.bf16.msra.mxu0 0
  %149 = vmatprep.subr.bf16.mxu0 0
  %150 = vmatpush2.bf16.msra.mxu0 0
  %151 = vmatprep.subr.bf16.mxu0 0
  %152 = vmatpush2.bf16.msra.mxu0 0
  %153 = vmatprep.subr.bf16.mxu0 0
  %154 = vmatpush2.bf16.msra.mxu0 0
  %155 = vmatprep.mubr.bf16.mxu0 0
  %156 = vmatmul.mubr.bf16.gmra.mxu0 %v96
  %v157 = vpop.f32.mrf.mxu0
  %v158 = vadd.f32 0.0, %v157
  %v159 = vpop.f32.mrf.mxu0
  %v160 = vpop.f32.mrf.mxu0
  %v161 = vadd.f32 0.0, %v160
  %v162 = vpop.f32.mrf.mxu0
  %163 = vmatprep.mubr.bf16.mxu0 0
  %164 = vmatmul.mubr.bf16.gmra.mxu0 %v99
  %v165 = vpop.f32.mrf.mxu0
  %v166 = vadd.f32 0.0, %v165
  %v167 = vpop.f32.mrf.mxu0
  %v168 = vpop.f32.mrf.mxu0
  %v169 = vadd.f32 0.0, %v168
  %v170 = vpop.f32.mrf.mxu0
  %171 = vmatprep.mubr.bf16.mxu0 0
  %172 = vmatmul.mubr.bf16.gmra.mxu0 %v102
  %v173 = vpop.f32.mrf.mxu0
  %v174 = vadd.f32 0.0, %v173
  %v175 = vpop.f32.mrf.mxu0
  %v176 = vpop.f32.mrf.mxu0
  %v177 = vadd.f32 0.0, %v176
  %v178 = vpop.f32.mrf.mxu0
  %179 = vmatprep.mubr.bf16.mxu0 0
  %180 = vmatmul.mubr.bf16.gmra.mxu0 %v105
  %v181 = vpop.f32.mrf.mxu0
  %v182 = vadd.f32 0.0, %v181
  %v183 = vpop.f32.mrf.mxu0
  %v184 = vpop.f32.mrf.mxu0
  %v185 = vadd.f32 0.0, %v184
  %v186 = vpop.f32.mrf.mxu0
  %187 = vmatprep.mubr.bf16.mxu0 0
  %188 = vmatmul.mubr.bf16.gmra.mxu0 %v108
  %v189 = vpop.f32.mrf.mxu0
  %v190 = vadd.f32 0.0, %v189
  %v191 = vpop.f32.mrf.mxu0
  %v192 = vpop.f32.mrf.mxu0
  %v193 = vadd.f32 0.0, %v192
  %v194 = vpop.f32.mrf.mxu0
  %195 = vmatprep.mubr.bf16.mxu0 0
  %196 = vmatmul.mubr.bf16.gmra.mxu0 %v111
  %v197 = vpop.f32.mrf.mxu0
  %v198 = vadd.f32 0.0, %v197
  %v199 = vpop.f32.mrf.mxu0
  %v200 = vpop.f32.mrf.mxu0
  %v201 = vadd.f32 0.0, %v200
  %v202 = vpop.f32.mrf.mxu0
  %203 = vmatprep.mubr.bf16.mxu0 0
  %204 = vmatmul.mubr.bf16.gmra.mxu0 %v114
  %v205 = vpop.f32.mrf.mxu0
  %v206 = vadd.f32 0.0, %v205
  %v207 = vpop.f32.mrf.mxu0
  %v208 = vpop.f32.mrf.mxu0
  %v209 = vadd.f32 0.0, %v208
  %v210 = vpop.f32.mrf.mxu0
  %211 = vmatprep.mubr.bf16.mxu0 0
  %212 = vmatmul.mubr.bf16.gmra.mxu0 %v117
  %v213 = vpop.f32.mrf.mxu0
  %v214 = vadd.f32 0.0, %v213
  %v215 = vpop.f32.mrf.mxu0
  %v216 = vpop.f32.mrf.mxu0
  %v217 = vadd.f32 0.0, %v216
  %v218 = vpop.f32.mrf.mxu0
  %219 = vdwg.mxu0
  %v220 = vld [vmem:[%s2] sm:$0x1]
  %v222 = vlaneseq
  %v223 = vshrl.u32 %v222, 7
  %v224 = vsub.s32 0, %v223
  %v225 = vrot.slane %v220, %v224
  %v227 = vmul.f32 %v158, %v225
  %v228 = vmul.f32 %v161, %v225
  %v229 = vmul.f32 %v166, %v225
  %v230 = vmul.f32 %v169, %v225
  %v231 = vmul.f32 %v174, %v225
  %v232 = vmul.f32 %v177, %v225
  %v233 = vmul.f32 %v182, %v225
  %v234 = vmul.f32 %v185, %v225
  %v235 = vmul.f32 %v190, %v225
  %v236 = vmul.f32 %v193, %v225
  %v237 = vmul.f32 %v198, %v225
  %v238 = vmul.f32 %v201, %v225
  %v239 = vmul.f32 %v206, %v225
  %v240 = vmul.f32 %v209, %v225
  %v241 = vmul.f32 %v214, %v225
  %v242 = vmul.f32 %v217, %v225
  %v243 = vld [vmem:[%s3] sm:$0x1]
  %v245 = vlaneseq
  %v246 = vshrl.u32 %v245, 7
  %v247 = vsub.s32 0, %v246
  %v248 = vrot.slane %v243, %v247
  %v250 = vadd.f32 %v227, %v248
  %v251 = vadd.f32 %v228, %v248
  %v252 = vadd.f32 %v229, %v248
  %v253 = vadd.f32 %v230, %v248
  %v254 = vadd.f32 %v231, %v248
  %v255 = vadd.f32 %v232, %v248
  %v256 = vadd.f32 %v233, %v248
  %v257 = vadd.f32 %v234, %v248
  %v258 = vadd.f32 %v235, %v248
  %v259 = vadd.f32 %v236, %v248
  %v260 = vadd.f32 %v237, %v248
  %v261 = vadd.f32 %v238, %v248
  %v262 = vadd.f32 %v239, %v248
  %v263 = vadd.f32 %v240, %v248
  %v264 = vadd.f32 %v241, %v248
  %v265 = vadd.f32 %v242, %v248
  %v266 = vmax.f32 %v250, 0.0
  %v267 = vmax.f32 %v251, 0.0
  %v268 = vmax.f32 %v252, 0.0
  %v269 = vmax.f32 %v253, 0.0
  %v270 = vmax.f32 %v254, 0.0
  %v271 = vmax.f32 %v255, 0.0
  %v272 = vmax.f32 %v256, 0.0
  %v273 = vmax.f32 %v257, 0.0
  %v274 = vmax.f32 %v258, 0.0
  %v275 = vmax.f32 %v259, 0.0
  %v276 = vmax.f32 %v260, 0.0
  %v277 = vmax.f32 %v261, 0.0
  %v278 = vmax.f32 %v262, 0.0
  %v279 = vmax.f32 %v263, 0.0
  %v280 = vmax.f32 %v264, 0.0
  %v281 = vmax.f32 %v265, 0.0
  %v282 = vpack.c.bf16 %v267, %v266
  %v283 = vpack.c.bf16 %v269, %v268
  %v284 = vpack.c.bf16 %v271, %v270
  %v285 = vpack.c.bf16 %v273, %v272
  %v286 = vpack.c.bf16 %v275, %v274
  %v287 = vpack.c.bf16 %v277, %v276
  %v288 = vpack.c.bf16 %v279, %v278
  %v289 = vpack.c.bf16 %v281, %v280
  %v298 = vunpack.c.l.b16 %v282
  %v299 = vunpack.c.h.b16 %v282
  %v300 = vunpack.c.l.b16 %v283
  %v301 = vunpack.c.h.b16 %v283
  %v302 = vunpack.c.l.b16 %v284
  %v303 = vunpack.c.h.b16 %v284
  %v304 = vunpack.c.l.b16 %v285
  %v305 = vunpack.c.h.b16 %v285
  %v306 = vunpack.c.l.b16 %v286
  %v307 = vunpack.c.h.b16 %v286
  %v308 = vunpack.c.l.b16 %v287
  %v309 = vunpack.c.h.b16 %v287
  %v310 = vunpack.c.l.b16 %v288
  %v311 = vunpack.c.h.b16 %v288
  %v312 = vunpack.c.l.b16 %v289
  %v313 = vunpack.c.h.b16 %v289
  %v314 = vpack.c.b16 %v298, %v298
  %v315 = vpack.c.b16 %v299, %v299
  %v316 = vpack.c.b16 %v300, %v300
  %v317 = vpack.c.b16 %v301, %v301
  %v318 = vpack.c.b16 %v302, %v302
  %v319 = vpack.c.b16 %v303, %v303
  %v320 = vpack.c.b16 %v304, %v304
  %v321 = vpack.c.b16 %v305, %v305
  %v322 = vpack.c.b16 %v306, %v306
  %v323 = vpack.c.b16 %v307, %v307
  %v324 = vpack.c.b16 %v308, %v308
  %v325 = vpack.c.b16 %v309, %v309
  %v326 = vpack.c.b16 %v310, %v310
  %v327 = vpack.c.b16 %v311, %v311
  %v328 = vpack.c.b16 %v312, %v312
  %v329 = vpack.c.b16 %v313, %v313
  %346 = vst [vmem:[%s4] sm:$0xf] %v314
  %347 = vst [vmem:[%s4 + $0x4] sm:$0xf] %v315
  %348 = vst [vmem:[%s4 + $0x8] sm:$0xf] %v316
  %349 = vst [vmem:[%s4 + $0xc] sm:$0xf] %v317
  %350 = vst [vmem:[%s4 + $0x10] sm:$0xf] %v318
  %351 = vst [vmem:[%s4 + $0x14] sm:$0xf] %v319
  %352 = vst [vmem:[%s4 + $0x18] sm:$0xf] %v320
  %353 = vst [vmem:[%s4 + $0x1c] sm:$0xf] %v321
  %354 = vst [vmem:[%s4 + $0x20] sm:$0xf] %v322
  %355 = vst [vmem:[%s4 + $0x24] sm:$0xf] %v323
  %356 = vst [vmem:[%s4 + $0x28] sm:$0xf] %v324
  %357 = vst [vmem:[%s4 + $0x2c] sm:$0xf] %v325
  %358 = vst [vmem:[%s4 + $0x30] sm:$0xf] %v326
  %359 = vst [vmem:[%s4 + $0x34] sm:$0xf] %v327
  %360 = vst [vmem:[%s4 + $0x38] sm:$0xf] %v328
  %361 = vst [vmem:[%s4 + $0x3c] sm:$0xf] %v329
  // Predicated region
  $region18: #{_basic_block2_forward.2} parent=0 // pred_check
    _
  $region19: #{_basic_block2_forward.2} parent=0 // pred_check_branch
    %363 = sbr.rel (0) target = $region21
  $region20: #{_basic_block2_forward.2} parent=0 // pred_region
    _
  $region21: #{_basic_block2_forward.2} parent=0 // pred_fallthru
    _
  // Predicated region
  $region22: #{_basic_block2_forward.2} parent=0 // pred_check
    _
  $region23: #{_basic_block2_forward.2} parent=0 // pred_check_branch
    %365 = sbr.rel (0) target = $region25
  $region24: #{_basic_block2_forward.2} parent=0 // pred_region
    _
  $region25: #{_basic_block2_forward.2} parent=0 // pred_fallthru
    _

// kernel: _basic_block2_forward.3
$region0: #{_basic_block2_forward.3}
  #allocation0 [shape = 'u32[]', space=smem, size = 0x4, offset = 0x4, fixed_abs, tag = 'smem constant byte address 0x4 - core index']
  #allocation1 [shape = 'u32[144,128]{1,0:T(1,128)}', space=vmem, size = 0x12000, scoped, tag = 'internal scratch']
  %s0 = inlined_call_operand.vmem [shape: bf16[32,72], index: 0, kind: input, shape index: {}]
  %s1 = inlined_call_operand.vmem [shape: bf16[72,128], index: 1, kind: input, shape index: {}]
  %s2 = inlined_call_operand.vmem [shape: f32[1,128], index: 2, kind: input, shape index: {}]
  %s3 = inlined_call_operand.vmem [shape: f32[1,128], index: 3, kind: input, shape index: {}]
  %s4 = inlined_call_operand.vmem [shape: f32[32,128], index: 4, kind: output, shape index: {}]
  %s5 = sld [smem:[#allocation0]]
  $region26: #{_basic_block2_forward.3} parent=0
    _
  %s7 = ssub.s32 1, %s5
  %s8 = scalar_select 0, %s7, %s5
  // Predicated region
  $region2: #{_basic_block2_forward.3} parent=0 // pred_check
    _
  $region3: #{_basic_block2_forward.3} parent=0 // pred_check_branch
    %10 = sbr.rel (0) target = $region5
  $region4: #{_basic_block2_forward.3} parent=0 // pred_region
    _
  $region5: #{_basic_block2_forward.3} parent=0 // pred_fallthru
    _
  // Predicated region
  $region6: #{_basic_block2_forward.3} parent=0 // pred_check
    _
  $region7: #{_basic_block2_forward.3} parent=0 // pred_check_branch
    %12 = sbr.rel (0) target = $region9
  $region8: #{_basic_block2_forward.3} parent=0 // pred_region
    _
  $region9: #{_basic_block2_forward.3} parent=0 // pred_fallthru
    _
  // Predicated region
  $region10: #{_basic_block2_forward.3} parent=0 // pred_check
    _
  $region11: #{_basic_block2_forward.3} parent=0 // pred_check_branch
    %14 = sbr.rel (0) target = $region13
  $region12: #{_basic_block2_forward.3} parent=0 // pred_region
    _
  $region13: #{_basic_block2_forward.3} parent=0 // pred_fallthru
    _
  // Predicated region
  $region14: #{_basic_block2_forward.3} parent=0 // pred_check
    _
  $region15: #{_basic_block2_forward.3} parent=0 // pred_check_branch
    %16 = sbr.rel (0) target = $region17
  $region16: #{_basic_block2_forward.3} parent=0 // pred_region
    _
  $region17: #{_basic_block2_forward.3} parent=0 // pred_fallthru
    _
  %v18 = vld [vmem:[%s0] sm:$0xf]
  %v19 = vld [vmem:[%s0 + $0x4] sm:$0xf]
  %v20 = vld [vmem:[%s0 + $0x8] sm:$0xf]
  %v21 = vld [vmem:[%s0 + $0xc] sm:$0xf]
  %v22 = vld [vmem:[%s1] sm:$0xf]
  %v23 = vld [vmem:[%s1 + $0x4] sm:$0xf]
  %v24 = vld [vmem:[%s1 + $0x8] sm:$0xf]
  %v25 = vld [vmem:[%s1 + $0xc] sm:$0xf]
  %v26 = vld [vmem:[%s1 + $0x10] sm:$0xf]
  %v27 = vld [vmem:[%s1 + $0x14] sm:$0xf]
  %v28 = vld [vmem:[%s1 + $0x18] sm:$0xf]
  %v29 = vld [vmem:[%s1 + $0x1c] sm:$0xf]
  %v30 = vld [vmem:[%s1 + $0x20] sm:$0xf]
  %v35 = vunpack.c.l.b16 %v18
  %v36 = vunpack.c.l.b16 %v19
  %v37 = vunpack.c.l.b16 %v20
  %v38 = vunpack.c.l.b16 %v21
  %v39 = vpack.c.b16 %v36, %v35
  %v40 = vpack.c.b16 %v38, %v37
  %v50 = vunpack.c.l.b16 %v22
  %v51 = vunpack.c.l.b16 %v23
  %v52 = vunpack.c.l.b16 %v24
  %v53 = vunpack.c.l.b16 %v25
  %v54 = vunpack.c.l.b16 %v26
  %v55 = vunpack.c.l.b16 %v27
  %v56 = vunpack.c.l.b16 %v28
  %v57 = vunpack.c.l.b16 %v29
  %v58 = vunpack.c.l.b16 %v30
  %v59 = vpack.c.b16 %v51, %v50
  %v60 = vpack.c.b16 %v53, %v52
  %v61 = vpack.c.b16 %v55, %v54
  %v62 = vpack.c.b16 %v57, %v56
  %v63 = vpack.c.b16 %v58, %v58
  %vm68 = vcmask 588800
  %v70 = vsel %vm68, %v39, 0
  %v73 = vsel %vm68, %v40, 0
  %vm75 = vcmask 1043456
  %v77 = vsel %vm75, %v63, 0
  %79 = vmatprep.subr.bf16.mxu0 0
  %80 = vmatpush1.bf16.msra.mxu0 0
  %81 = vmatprep.subr.bf16.mxu0 0
  %82 = vmatpush1.bf16.msra.mxu0 0
  %83 = vmatprep.subr.bf16.mxu0 0
  %84 = vmatpush1.bf16.msra.mxu0 0
  %85 = vmatprep.subr.bf16.mxu0 0
  %86 = vmatpush1.bf16.msra.mxu0 %v77
  %87 = vmatprep.subr.bf16.mxu0 0
  %88 = vmatpush1.bf16.msra.mxu0 %v62
  %89 = vmatprep.subr.bf16.mxu0 0
  %90 = vmatpush1.bf16.msra.mxu0 %v61
  %91 = vmatprep.subr.bf16.mxu0 0
  %92 = vmatpush1.bf16.msra.mxu0 %v60
  %93 = vmatprep.subr.bf16.mxu0 0
  %94 = vmatpush1.bf16.msra.mxu0 %v59
  %95 = vmatprep.subr.bf16.mxu0 0
  %96 = vmatpush2.bf16.msra.mxu0 0
  %97 = vmatprep.subr.bf16.mxu0 0
  %98 = vmatpush2.bf16.msra.mxu0 0
  %99 = vmatprep.subr.bf16.mxu0 0
  %100 = vmatpush2.bf16.msra.mxu0 0
  %101 = vmatprep.subr.bf16.mxu0 0
  %102 = vmatpush2.bf16.msra.mxu0 0
  %103 = vmatprep.subr.bf16.mxu0 0
  %104 = vmatpush2.bf16.msra.mxu0 0
  %105 = vmatprep.subr.bf16.mxu0 0
  %106 = vmatpush2.bf16.msra.mxu0 0
  %107 = vmatprep.subr.bf16.mxu0 0
  %108 = vmatpush2.bf16.msra.mxu0 0
  %109 = vmatprep.subr.bf16.mxu0 0
  %110 = vmatpush2.bf16.msra.mxu0 0
  %111 = vmatprep.mubr.bf16.mxu0 0
  %112 = vmatmul.mubr.bf16.gmra.mxu0 %v70
  %v113 = vpop.f32.mrf.mxu0
  %v114 = vadd.f32 0.0, %v113
  %v115 = vpop.f32.mrf.mxu0
  %v116 = vpop.f32.mrf.mxu0
  %v117 = vadd.f32 0.0, %v116
  %v118 = vpop.f32.mrf.mxu0
  %119 = vmatprep.mubr.bf16.mxu0 0
  %120 = vmatmul.mubr.bf16.gmra.mxu0 %v73
  %v121 = vpop.f32.mrf.mxu0
  %v122 = vadd.f32 0.0, %v121
  %v123 = vpop.f32.mrf.mxu0
  %v124 = vpop.f32.mrf.mxu0
  %v125 = vadd.f32 0.0, %v124
  %v126 = vpop.f32.mrf.mxu0
  %127 = vdwg.mxu0
  %v128 = vld [vmem:[%s2] sm:$0x1]
  %v130 = vlaneseq
  %v131 = vshrl.u32 %v130, 7
  %v132 = vsub.s32 0, %v131
  %v133 = vrot.slane %v128, %v132
  %v135 = vmul.f32 %v114, %v133
  %v136 = vmul.f32 %v117, %v133
  %v137 = vmul.f32 %v122, %v133
  %v138 = vmul.f32 %v125, %v133
  %v139 = vld [vmem:[%s3] sm:$0x1]
  %v141 = vlaneseq
  %v142 = vshrl.u32 %v141, 7
  %v143 = vsub.s32 0, %v142
  %v144 = vrot.slane %v139, %v143
  %v146 = vadd.f32 %v135, %v144
  %v147 = vadd.f32 %v136, %v144
  %v148 = vadd.f32 %v137, %v144
  %v149 = vadd.f32 %v138, %v144
  %v150 = vmax.f32 %v146, 0.0
  %v151 = vmax.f32 %v147, 0.0
  %v152 = vmax.f32 %v148, 0.0
  %v153 = vmax.f32 %v149, 0.0
  %154 = vst [vmem:[%s4] sm:$0xff] %v150
  %155 = vst [vmem:[%s4 + $0x8] sm:$0xff] %v151
  %156 = vst [vmem:[%s4 + $0x10] sm:$0xff] %v152
  %157 = vst [vmem:[%s4 + $0x18] sm:$0xff] %v153
  // Predicated region
  $region18: #{_basic_block2_forward.3} parent=0 // pred_check
    _
  $region19: #{_basic_block2_forward.3} parent=0 // pred_check_branch
    %159 = sbr.rel (0) target = $region21
  $region20: #{_basic_block2_forward.3} parent=0 // pred_region
    _
  $region21: #{_basic_block2_forward.3} parent=0 // pred_fallthru
    _
  // Predicated region
  $region22: #{_basic_block2_forward.3} parent=0 // pred_check
    _
  $region23: #{_basic_block2_forward.3} parent=0 // pred_check_branch
    %161 = sbr.rel (0) target = $region25
  $region24: #{_basic_block2_forward.3} parent=0 // pred_region
    _
  $region25: #{_basic_block2_forward.3} parent=0 // pred_fallthru
    _

</llo_original>
